<compile_context>
chip_gen: v7x
topology: tpu7x:2x2x1
jax: 0.10.0
libtpu: 0.0.40
codegen_flags: <defaults>
</compile_context>

<pallas_src>
import jax
import jax.numpy as jnp
from jax import lax
from jax.experimental import pallas as pl
from jax.experimental.pallas import tpu as pltpu


def _pair(v):
    if isinstance(v, (tuple, list)):
        return (int(v[0]), int(v[1]))
    return (int(v), int(v))


def _window_matrices(h, w, hout, wout, kh, kw, sh, sw, ph, pw):
    """0/1 window matrices on the UNPADDED grid.

    Out-of-range (padded) cells simply select nothing, which matches
    F.avg_pool2d's zero padding of BOTH x*e_x and e_x (numerator and
    denominator), so explicit spatial padding is never materialized.
    """
    hi = jnp.arange(h)
    ho = jnp.arange(hout)
    q = ((hi[None, :] >= ho[:, None] * sh - ph) &
         (hi[None, :] < ho[:, None] * sh - ph + kh)).astype(jnp.float32)   # (Hout, H)
    wi = jnp.arange(w)
    wo = jnp.arange(wout)
    p = ((wi[:, None] >= wo[None, :] * sw - pw) &
         (wi[:, None] < wo[None, :] * sw - pw + kw)).astype(jnp.float32)   # (W, Wout)
    return q, p


def _vmem_limit_bytes():
    """Per-generation scoped-VMEM limit: capacity - 16 MiB headroom, <= 96 MiB."""
    try:
        cap = int(pltpu.get_tpu_info().vmem_capacity_bytes)
    except Exception:
        cap = 64 * 1024 * 1024          # conservative (v7x-sized) default
    return int(max(32 * 1024 * 1024, min(cap - 16 * 1024 * 1024,
                                         96 * 1024 * 1024)))


# ---------------------------------------------------------------------------
# Shared pooling body (runs on data already resident in VMEM / vregs).
# ---------------------------------------------------------------------------
def _pool_ratio(x, ex, q, p, out_dtype):
    """SoftPool ratio for one (C_block, H, W) slab.

    x  : (C, H, W)  f32
    ex : (H, W)     f32   channel-summed exp(x)
    q  : (Hout, H)  f32   0/1 row-window matrix (padding folded in)
    p  : (W, Wout)  f32   0/1 col-window matrix (padding folded in)
    returns (C, Hout, Wout) in out_dtype
    """
    c, h, w = x.shape
    hout = q.shape[0]
    wout = p.shape[1]

    y = x * ex[None, :, :]                                        # (C, H, W)

    # W-pool: a single dense 2-D MXU matmul over all channels of the block.
    yw = jnp.dot(y.reshape(c * h, w), p,
                 preferred_element_type=jnp.float32)              # (C*H, Wout)

    # H-pool: swap the last two dims (XLU vxpose, free slot) so H becomes the
    # contraction dim of ONE dense 2-D matmul.  No kron(I_C, q): operand size
    # and MXU work no longer scale with C^2 / C.
    ywt = jnp.swapaxes(yw.reshape(c, h, wout), 1, 2)              # (C, Wout, H)
    numt = lax.dot_general(ywt.reshape(c * wout, h), q,
                           (((1,), (1,)), ((), ())),
                           preferred_element_type=jnp.float32)    # (C*Wout, Hout)
    num = jnp.swapaxes(numt.reshape(c, wout, hout), 1, 2)         # (C, Hout, Wout)

    # Denominator (channel independent): two tiny matmuls + one reciprocal.
    dw = jnp.dot(ex, p, preferred_element_type=jnp.float32)       # (H, Wout)
    den = jnp.dot(q, dw, preferred_element_type=jnp.float32)      # (Hout, Wout)
    inv = pl.reciprocal(den, approx=False)

    # Free broadcast over the leading (non-tiled) channel dim -- no jnp.tile.
    return (num * inv[None, :, :]).astype(out_dtype)


# ---------------------------------------------------------------------------
# Primary fused kernel: one grid step per batch; x is read from HBM once and
# e_x never leaves VMEM.
# ---------------------------------------------------------------------------
def _fused_kernel(x_ref, q_ref, p_ref, o_ref):
    x = x_ref[...].astype(jnp.float32)                            # (C, H, W)
    ex = jnp.sum(jnp.exp(x), axis=0)                              # (H, W)
    o_ref[...] = _pool_ratio(x, ex, q_ref[...], p_ref[...], o_ref.dtype)


# ---------------------------------------------------------------------------
# Fallback (very large per-batch slabs): two-pass, channel-tiled.
# ---------------------------------------------------------------------------
def _exp_sum_kernel(x_ref, o_ref):
    @pl.when(pl.program_id(1) == 0)
    def _init():
        o_ref[...] = jnp.zeros_like(o_ref)

    o_ref[...] += jnp.sum(jnp.exp(x_ref[...].astype(jnp.float32)), axis=0)


def _pool_kernel(ex_ref, x_ref, q_ref, p_ref, o_ref):
    # Note: the tiny denominator is recomputed per channel tile here; this is
    # only the fallback path (the fused path computes it once per batch).
    o_ref[...] = _pool_ratio(x_ref[...].astype(jnp.float32), ex_ref[...],
                             q_ref[...], p_ref[...], o_ref.dtype)


def _pick_c_tile(c, h, w, itemsize, budget_bytes):
    """Largest divisor of C whose (ct, H, W) block fits the byte budget."""
    best = 1
    for ct in range(1, c + 1):
        if c % ct:
            continue
        if ct * h * w * itemsize <= budget_bytes:
            best = ct
    return best


def soft_pool2d(x, kernel_size, stride=None, padding=0, force_two_pass=False):
    kh, kw = _pair(kernel_size)
    sh, sw = _pair(stride) if stride is not None else (kh, kw)
    ph, pw = _pair(padding)

    n, c, h, w = x.shape
    hout = (h + 2 * ph - kh) // sh + 1
    wout = (w + 2 * pw - kw) // sw + 1
    q, p = _window_matrices(h, w, hout, wout, kh, kw, sh, sw, ph, pw)

    itemsize = int(jnp.dtype(x.dtype).itemsize)
    vmem_limit = _vmem_limit_bytes()
    out_shape = jax.ShapeDtypeStruct((n, c, hout, wout), x.dtype)

    pool_flops_per_batch = (2 * c * h * w * wout            # W-pool
                            + 2 * c * wout * h * hout       # H-pool
                            + 2 * (h * w * wout + hout * h * wout)  # denominator
                            + 4 * c * h * w                 # elementwise
                            + 2 * c * hout * wout)

    # Fused-path budget: double-buffered x block + ~3 block-sized f32 temps
    # (exp, y, pooled intermediates) + double-buffered output block.
    fused_bytes = (c * h * w * (2 * itemsize + 3 * 4)
                   + 2 * c * hout * wout * itemsize)
    use_fused = (not force_two_pass) and fused_bytes <= (3 * vmem_limit) // 4

    if use_fused:
        return pl.pallas_call(
            _fused_kernel,
            out_shape=out_shape,
            grid=(n,),
            in_specs=[
                pl.BlockSpec((None, c, h, w), lambda b: (b, 0, 0, 0)),   # x
                pl.BlockSpec((hout, h), lambda b: (0, 0)),               # q
                pl.BlockSpec((w, wout), lambda b: (0, 0)),               # p
            ],
            out_specs=pl.BlockSpec((None, c, hout, wout),
                                   lambda b: (b, 0, 0, 0)),
            compiler_params=pltpu.CompilerParams(
                dimension_semantics=("parallel",),
                vmem_limit_bytes=vmem_limit),
            cost_estimate=pl.CostEstimate(
                flops=n * pool_flops_per_batch,
                transcendentals=n * c * h * w,
                bytes_accessed=(n * c * h * w * itemsize
                                + n * c * hout * wout * itemsize
                                + 4 * (q.size + p.size))),
        )(x, q, p)

    # ---- fallback: two-pass, channel-tiled ---------------------------------
    # TODO(synk): extremely large single-channel spatial maps (H*W alone over
    # the budget) would additionally need spatial tiling of the pooling pass.
    ct = _pick_c_tile(c, h, w, itemsize,
                      budget_bytes=min(12 * 1024 * 1024, vmem_limit // 8))
    nct = c // ct

    e_x = pl.pallas_call(
        _exp_sum_kernel,
        out_shape=jax.ShapeDtypeStruct((n, h, w), jnp.float32),
        grid=(n, nct),
        in_specs=[pl.BlockSpec((None, ct, h, w), lambda b, cc: (b, cc, 0, 0))],
        out_specs=pl.BlockSpec((None, h, w), lambda b, cc: (b, 0, 0)),
        compiler_params=pltpu.CompilerParams(
            dimension_semantics=("parallel", "arbitrary"),
            vmem_limit_bytes=vmem_limit),
        cost_estimate=pl.CostEstimate(
            flops=n * c * h * w,
            transcendentals=n * c * h * w,
            bytes_accessed=n * c * h * w * itemsize + n * h * w * 4),
    )(x)

    return pl.pallas_call(
        _pool_kernel,
        out_shape=out_shape,
        grid=(n, nct),
        in_specs=[
            pl.BlockSpec((None, h, w), lambda b, cc: (b, 0, 0)),           # e_x
            pl.BlockSpec((None, ct, h, w), lambda b, cc: (b, cc, 0, 0)),   # x tile
            pl.BlockSpec((hout, h), lambda b, cc: (0, 0)),                 # q
            pl.BlockSpec((w, wout), lambda b, cc: (0, 0)),                 # p
        ],
        out_specs=pl.BlockSpec((None, ct, hout, wout),
                               lambda b, cc: (b, cc, 0, 0)),
        compiler_params=pltpu.CompilerParams(
            dimension_semantics=("parallel", "parallel"),
            vmem_limit_bytes=vmem_limit),
        cost_estimate=pl.CostEstimate(
            flops=n * pool_flops_per_batch,
            transcendentals=0,
            bytes_accessed=(n * c * h * w * itemsize
                            + n * nct * h * w * 4
                            + n * c * hout * wout * itemsize
                            + 4 * (q.size + p.size))),
    )(e_x, x, q, p)


class SoftPool2d:
    """Mirror of the PyTorch module (no learnable parameters)."""

    def __init__(self, kernel_size, stride, padding=0):
        self.kernel_size = kernel_size
        self.stride = stride
        self.padding = padding

    def __call__(self, x):
        return soft_pool2d(x, self.kernel_size, self.stride, self.padding)


def _ref_soft_pool2d(x, kernel_size, stride=None, padding=0):
    """Pure-JAX reference matching the PyTorch forward."""
    kh, kw = _pair(kernel_size)
    sh, sw = _pair(stride) if stride is not None else (kh, kw)
    ph, pw = _pair(padding)
    e_x = jnp.sum(jnp.exp(x), axis=1, keepdims=True)

    def avg_pool(v):
        s = lax.reduce_window(v, 0.0, lax.add, (1, 1, kh, kw), (1, 1, sh, sw),
                              ((0, 0), (0, 0), (ph, ph), (pw, pw)))
        return s / float(kh * kw)

    num = avg_pool(x * e_x) * float(kh + kw)
    den = avg_pool(e_x) * float(kh + kw)
    return num / den


if __name__ == "__main__":
    key = jax.random.PRNGKey(0)
    x = jax.random.normal(key, (2, 4, 16, 16), dtype=jnp.float32)

    # Case 1: module configuration used in LinearVIT (k=2, s=2, p=0) — fused path.
    pool = SoftPool2d(kernel_size=2, stride=2, padding=0)
    y = jax.block_until_ready(pool(x))
    y_ref = _ref_soft_pool2d(x, 2, 2, 0)
    assert y.shape == (2, 4, 8, 8), y.shape
    assert jnp.allclose(y, y_ref, rtol=1e-4, atol=1e-4), float(
        jnp.max(jnp.abs(y - y_ref)))

    # Case 2: overlapping windows + nonzero padding (padding folded into the
    # window matrices) — fused path.
    y2 = jax.block_until_ready(soft_pool2d(x, kernel_size=3, stride=2, padding=1))
    y2_ref = _ref_soft_pool2d(x, 3, 2, 1)
    assert y2.shape == (2, 4, 8, 8), y2.shape
    assert jnp.allclose(y2, y2_ref, rtol=1e-4, atol=1e-4), float(
        jnp.max(jnp.abs(y2 - y2_ref)))

    # Case 3: force the two-pass channel-tiled fallback path (used when the
    # per-batch slab would not fit VMEM) and check it matches as well.
    y3 = jax.block_until_ready(
        soft_pool2d(x, kernel_size=2, stride=2, padding=0, force_two_pass=True))
    assert y3.shape == (2, 4, 8, 8), y3.shape
    assert jnp.allclose(y3, y_ref, rtol=1e-4, atol=1e-4), float(
        jnp.max(jnp.abs(y3 - y_ref)))

    print("KERNEL_OK")
</pallas_src>

<mosaic_0001>
module attributes {stable_mosaic.version = 11 : i64} {
  func.func @_fused_kernel(%arg0: i32, %arg1: memref<1x4x16x16xf32, #tpu.memory_space<vmem>>, %arg2: memref<8x16xf32, #tpu.memory_space<vmem>>, %arg3: memref<16x8xf32, #tpu.memory_space<vmem>>, %arg4: memref<1x4x8x8xf32, #tpu.memory_space<vmem>>) attributes {dimension_semantics = [#tpu.dimension_semantics<parallel>], iteration_bounds = array<i64: 2>, scalar_prefetch = 0 : i64, scratch_operands = 0 : i64, tpu.core_type = #tpu.core_type<tc>, window_params = [{transform_indices = @transform_0, window_bounds = array<i64: 1, 4, 16, 16>}, {pipeline_mode = #tpu.pipeline_mode<synchronous>, transform_indices = @transform_1, window_bounds = array<i64: 8, 16>}, {pipeline_mode = #tpu.pipeline_mode<synchronous>, transform_indices = @transform_2, window_bounds = array<i64: 16, 8>}, {transform_indices = @transform_3, window_bounds = array<i64: 1, 4, 8, 8>}]} {
    %c0 = arith.constant 0 : index
    %c0_0 = arith.constant 0 : index
    %c0_1 = arith.constant 0 : index
    %c0_2 = arith.constant 0 : index
    %0 = vector.load %arg1[%c0, %c0_0, %c0_1, %c0_2] : memref<1x4x16x16xf32, #tpu.memory_space<vmem>>, vector<1x4x16x16xf32>
    %1 = vector.shape_cast %0 : vector<1x4x16x16xf32> to vector<4x16x16xf32>
    %2 = math.exp %1 : vector<4x16x16xf32>
    %cst = arith.constant dense<0.000000e+00> : vector<16x16xf32>
    %3 = vector.multi_reduction <add>, %2, %cst [0] : vector<4x16x16xf32> to vector<16x16xf32>
    %c0_3 = arith.constant 0 : index
    %c0_4 = arith.constant 0 : index
    %4 = vector.load %arg2[%c0_3, %c0_4] : memref<8x16xf32, #tpu.memory_space<vmem>>, vector<8x16xf32>
    %c0_5 = arith.constant 0 : index
    %c0_6 = arith.constant 0 : index
    %5 = vector.load %arg3[%c0_5, %c0_6] : memref<16x8xf32, #tpu.memory_space<vmem>>, vector<16x8xf32>
    %6 = vector.shape_cast %3 : vector<16x16xf32> to vector<1x16x16xf32>
    %7 = vector.broadcast %6 : vector<1x16x16xf32> to vector<4x16x16xf32>
    %8 = arith.mulf %1, %7 : vector<4x16x16xf32>
    %9 = vector.shape_cast %8 : vector<4x16x16xf32> to vector<64x16xf32>
    %cst_7 = arith.constant dense<0.000000e+00> : vector<64x8xf32>
    %10 = tpu.matmul %9, %5, %cst_7 {dimension_numbers = #tpu.dot_dimension_numbers<[1], [0], [0], [1], [0, 0, 1, 1], [], []>} : vector<64x16xf32>, vector<16x8xf32>, vector<64x8xf32> -> vector<64x8xf32>
    %11 = vector.shape_cast %10 : vector<64x8xf32> to vector<4x16x8xf32>
    %12 = tpu.transpose %11, [0, 2, 1] : vector<4x16x8xf32> -> vector<4x8x16xf32>
    %13 = vector.shape_cast %12 : vector<4x8x16xf32> to vector<32x16xf32>
    %cst_8 = arith.constant dense<0.000000e+00> : vector<32x8xf32>
    %14 = tpu.matmul %13, %4, %cst_8 {dimension_numbers = #tpu.dot_dimension_numbers<[1], [1], [0], [0], [0, 0, 1, 0], [], []>} : vector<32x16xf32>, vector<8x16xf32>, vector<32x8xf32> -> vector<32x8xf32>
    %15 = vector.shape_cast %14 : vector<32x8xf32> to vector<4x8x8xf32>
    %16 = tpu.transpose %15, [0, 2, 1] : vector<4x8x8xf32> -> vector<4x8x8xf32>
    %cst_9 = arith.constant dense<0.000000e+00> : vector<16x8xf32>
    %17 = tpu.matmul %3, %5, %cst_9 {dimension_numbers = #tpu.dot_dimension_numbers<[1], [0], [0], [1], [0, 0, 1, 1], [], []>} : vector<16x16xf32>, vector<16x8xf32>, vector<16x8xf32> -> vector<16x8xf32>
    %cst_10 = arith.constant dense<0.000000e+00> : vector<8x8xf32>
    %18 = tpu.matmul %4, %17, %cst_10 {dimension_numbers = #tpu.dot_dimension_numbers<[1], [0], [0], [1], [0, 0, 1, 1], [], []>} : vector<8x16xf32>, vector<16x8xf32>, vector<8x8xf32> -> vector<8x8xf32>
    %19 = tpu.reciprocal %18 : vector<8x8xf32> -> vector<8x8xf32>
    %20 = vector.shape_cast %19 : vector<8x8xf32> to vector<1x8x8xf32>
    %21 = vector.broadcast %20 : vector<1x8x8xf32> to vector<4x8x8xf32>
    %22 = arith.mulf %16, %21 : vector<4x8x8xf32>
    %c0_11 = arith.constant 0 : index
    %c0_12 = arith.constant 0 : index
    %c0_13 = arith.constant 0 : index
    %c0_14 = arith.constant 0 : index
    %23 = vector.load %arg4[%c0_11, %c0_12, %c0_13, %c0_14] : memref<1x4x8x8xf32, #tpu.memory_space<vmem>>, vector<1x4x8x8xf32>
    %24 = vector.shape_cast %23 : vector<1x4x8x8xf32> to vector<4x8x8xf32>
    %25 = vector.shape_cast %22 : vector<4x8x8xf32> to vector<1x4x8x8xf32>
    tpu.vector_store %arg4[%c0_11, %c0_12, %c0_13, %c0_14], %25 {strides = array<i32>} : memref<1x4x8x8xf32, #tpu.memory_space<vmem>>, vector<1x4x8x8xf32>,
    return
  }
  func.func @transform_0(%arg0: i32) -> (i32, i32, i32, i32) {
    %c0_i32 = arith.constant 0 : i32
    %c0_i32_0 = arith.constant 0 : i32
    %c0_i32_1 = arith.constant 0 : i32
    %c0_i32_2 = arith.constant 0 : i32
    return %arg0, %c0_i32, %c0_i32_0, %c0_i32_1 : i32, i32, i32, i32
  }
  func.func @transform_1(%arg0: i32) -> (i32, i32) {
    %c0_i32 = arith.constant 0 : i32
    %c0_i32_0 = arith.constant 0 : i32
    %c0_i32_1 = arith.constant 0 : i32
    return %c0_i32, %c0_i32_0 : i32, i32
  }
  func.func @transform_2(%arg0: i32) -> (i32, i32) {
    %c0_i32 = arith.constant 0 : i32
    %c0_i32_0 = arith.constant 0 : i32
    %c0_i32_1 = arith.constant 0 : i32
    return %c0_i32, %c0_i32_0 : i32, i32
  }
  func.func @transform_3(%arg0: i32) -> (i32, i32, i32, i32) {
    %c0_i32 = arith.constant 0 : i32
    %c0_i32_0 = arith.constant 0 : i32
    %c0_i32_1 = arith.constant 0 : i32
    %c0_i32_2 = arith.constant 0 : i32
    return %arg0, %c0_i32, %c0_i32_0, %c0_i32_1 : i32, i32, i32, i32
  }
}

</mosaic_0001>

<llo_original>
// kernel: tpu_custom_call.1
$region0: #{tpu_custom_call.1}
  #allocation0 [shape = 'u32[]', space=smem, size = 0x4, offset = 0x4, fixed_abs, tag = 'smem constant byte address 0x4 - core index']
  #allocation1 [shape = 'u32[144,128]{1,0:T(1,128)}', space=vmem, size = 0x12000, scoped, tag = 'internal scratch']
  %s0 = inlined_call_operand.hbm [shape: f32[2,4,16,16], index: 0, kind: input, shape index: {}]
  %s1 = inlined_call_operand.vmem [shape: f32[8,16], index: 1, kind: input, shape index: {}]
  %s2 = inlined_call_operand.vmem [shape: f32[16,8], index: 2, kind: input, shape index: {}]
  %s3 = inlined_call_operand.hbm [shape: f32[2,4,8,8], index: 3, kind: output, shape index: {}]
  %s4 = sld [smem:[#allocation0]]
  $region49: #{tpu_custom_call.1} parent=0
    _
  %s6 = ssub.s32 1, %s4
  %s7 = scalar_select 0, %s6, %s4
  $region1: #{tpu_custom_call.1} parent=0
    #allocation2 [shape = 'u8[65536]{0}', space=vmem, size = 0x10000, scoped, tag = 'input window, operand 0']
    #allocation3 [shape = 's32[2]{0}', space=sflag, size = 0x8, scoped, tag = 'scoped memory for tpu_custom_call.1']
    #allocation4 [shape = 's32[2]{0}', space=sflag, size = 0x8, scoped, tag = 'scoped memory for tpu_custom_call.1']
    #allocation5 [shape = 'u8[32768]{0}', space=vmem, size = 0x8000, scoped, tag = 'output window, operand 0']
    %8 = vsyncpa [#allocation3], 0
    %s9 = scalar_lea.sflag [#allocation3], 1
    %10 = vsyncpa %s9, 0
    %11 = vsyncpa [#allocation4], 0
    %s12 = scalar_lea.sflag [#allocation4], 1
    %13 = vsyncpa %s12, 0
    loop: start=0, step=1, limit=4
    $region2: #{tpu_custom_call.1} parent=1 // loop_pre_header
      _
    $region3: #{tpu_custom_call.1} parent=1 // loop_header
      %s15 = sphi 0, %s19
      %p16 = scmp.ge.s32.totalorder %s15, 4
      %s25 = sphi 0, %s27
      %s28 = sphi 0, %s25
      %s29 = sphi 0, %s28
      %s45 = sphi 0, %s29
      %s49 = sphi 0, %s49
      %s51 = sphi 0, %s49
      %s52 = sphi 0, %s51
      %s66 = sphi 0, %s52
      %s70 = sphi 0, %s70
      %s72 = sphi 0, %s70
      %s73 = sphi 0, %s72
      %s87 = sphi 0, %s73
      %s93 = sphi 0, %s95
      %s96 = sphi 0, %s93
      %s97 = sphi 0, %s96
      %s113 = sphi 0, %s97
    $region4: #{tpu_custom_call.1} parent=1 // loop_header_branch
      %18 = sbr.rel (%p16) target = $region8
    $region5: #{tpu_custom_call.1} parent=1 // loop_body
      %s20 = ssub.s32 %s15, 1
      %s21 = ssub.s32 %s15, 2
      %s22 = sadd.s32 %s15, 1
      %s23 = ssub.s32 %s15, %s22
      %p24 = scmp.eq.s32.totalorder %s23, 0
      %s26 = sadd.s32 %s25, 1
      %s27 = scalar_select %p24, %s25, %s26
      %p30 = pneg %p24
      %p31 = scmp.eq.s32.totalorder %s15, 1
      %p32 = por %p30, %p31
      %p33 = scmp.ne.s32.totalorder %s25, %s28
      %p34 = scmp.eq.s32.totalorder %s15, 0
      %p35 = por %p33, %p34
      %p36 = scmp.ne.s32.totalorder %s25, %s28
      %p37 = scmp.eq.s32.totalorder %s20, 1
      %p38 = por %p36, %p37
      %p39 = scmp.ne.s32.totalorder %s28, %s29
      %p40 = scmp.eq.s32.totalorder %s20, 0
      %p41 = por %p39, %p40
      %p42 = scmp.ne.s32.totalorder %s28, %s29
      %p43 = scmp.eq.s32.totalorder %s21, 1
      %p44 = por %p42, %p43
      %p46 = scmp.ne.s32.totalorder %s29, %s45
      %p47 = scmp.eq.s32.totalorder %s21, 0
      %p48 = por %p46, %p47
      %s50 = sadd.s32 %s49, 1
      %p53 = scmp.eq.s32.totalorder %s15, 1
      %p54 = scmp.ne.s32.totalorder %s49, %s51
      %p55 = scmp.eq.s32.totalorder %s15, 0
      %p56 = por %p54, %p55
      %p57 = scmp.ne.s32.totalorder %s49, %s51
      %p58 = scmp.eq.s32.totalorder %s20, 1
      %p59 = por %p57, %p58
      %p60 = scmp.ne.s32.totalorder %s51, %s52
      %p61 = scmp.eq.s32.totalorder %s20, 0
      %p62 = por %p60, %p61
      %p63 = scmp.ne.s32.totalorder %s51, %s52
      %p64 = scmp.eq.s32.totalorder %s21, 1
      %p65 = por %p63, %p64
      %p67 = scmp.ne.s32.totalorder %s52, %s66
      %p68 = scmp.eq.s32.totalorder %s21, 0
      %p69 = por %p67, %p68
      %s71 = sadd.s32 %s70, 1
      %p74 = scmp.eq.s32.totalorder %s15, 1
      %p75 = scmp.ne.s32.totalorder %s70, %s72
      %p76 = scmp.eq.s32.totalorder %s15, 0
      %p77 = por %p75, %p76
      %p78 = scmp.ne.s32.totalorder %s70, %s72
      %p79 = scmp.eq.s32.totalorder %s20, 1
      %p80 = por %p78, %p79
      %p81 = scmp.ne.s32.totalorder %s72, %s73
      %p82 = scmp.eq.s32.totalorder %s20, 0
      %p83 = por %p81, %p82
      %p84 = scmp.ne.s32.totalorder %s72, %s73
      %p85 = scmp.eq.s32.totalorder %s21, 1
      %p86 = por %p84, %p85
      %p88 = scmp.ne.s32.totalorder %s73, %s87
      %p89 = scmp.eq.s32.totalorder %s21, 0
      %p90 = por %p88, %p89
      %s91 = ssub.s32 %s15, %s22
      %p92 = scmp.eq.s32.totalorder %s91, 0
      %s94 = sadd.s32 %s93, 1
      %s95 = scalar_select %p92, %s93, %s94
      %p98 = pneg %p92
      %p99 = scmp.eq.s32.totalorder %s15, 1
      %p100 = por %p98, %p99
      %p101 = scmp.ne.s32.totalorder %s93, %s96
      %p102 = scmp.eq.s32.totalorder %s15, 0
      %p103 = por %p101, %p102
      %p104 = scmp.ne.s32.totalorder %s93, %s96
      %p105 = scmp.eq.s32.totalorder %s20, 1
      %p106 = por %p104, %p105
      %p107 = scmp.ne.s32.totalorder %s96, %s97
      %p108 = scmp.eq.s32.totalorder %s20, 0
      %p109 = por %p107, %p108
      %p110 = scmp.ne.s32.totalorder %s96, %s97
      %p111 = scmp.eq.s32.totalorder %s21, 1
      %p112 = por %p110, %p111
      %p114 = scmp.ne.s32.totalorder %s97, %s113
      %p115 = scmp.eq.s32.totalorder %s21, 0
      %p116 = por %p114, %p115
      %p117 = scmp.le.s32.totalorder 1, %s15
      %p118 = scmp.lt.s32.totalorder %s15, 3
      %p119 = pnand %p117, %p118
      %p120 = pneg %p119
      // Predicated region
      $region9: #{tpu_custom_call.1} parent=5 // pred_check
        _
      $region10: #{tpu_custom_call.1} parent=5 // pred_check_branch
        %122 = sbr.rel (%p119) target = $region12
      $region11: #{tpu_custom_call.1} parent=5 // pred_region
        %s123 = ssub.s32 %s15, 1
        // Predicated region
        $region13: #{tpu_custom_call.1} parent=11 // pred_check
          %p124 = pneg %p62
        $region14: #{tpu_custom_call.1} parent=11 // pred_check_branch
          %126 = sbr.rel (%p124) target = $region16
        $region15: #{tpu_custom_call.1} parent=11 // pred_region
          _
        $region16: #{tpu_custom_call.1} parent=11 // pred_fallthru
          _
        // Predicated region
        $region17: #{tpu_custom_call.1} parent=11 // pred_check
          %p127 = pneg %p83
        $region18: #{tpu_custom_call.1} parent=11 // pred_check_branch
          %129 = sbr.rel (%p127) target = $region20
        $region19: #{tpu_custom_call.1} parent=11 // pred_region
          _
        $region20: #{tpu_custom_call.1} parent=11 // pred_fallthru
          _
      $region12: #{tpu_custom_call.1} parent=5 // pred_fallthru
        _
      %p130 = scmp.lt.s32.totalorder %s15, 2
      // Predicated region
      $region21: #{tpu_custom_call.1} parent=5 // pred_check
        %p131 = pneg %p130
      $region22: #{tpu_custom_call.1} parent=5 // pred_check_branch
        %133 = sbr.rel (%p131) target = $region24
      $region23: #{tpu_custom_call.1} parent=5 // pred_region
        // Predicated region
        $region25: #{tpu_custom_call.1} parent=23 // pred_check
          %p134 = pneg %p35
        $region26: #{tpu_custom_call.1} parent=23 // pred_check_branch
          %136 = sbr.rel (%p134) target = $region28
        $region27: #{tpu_custom_call.1} parent=23 // pred_region
          %s137 = sand.u32 %s25, 1
          %s138 = scalar_lea.sflag [#allocation3], %s137
          %s139 = sand.u32 %s25, 1
          %s140 = smul.addr %s139, 64
          %s141 = scalar_lea.vmem [#allocation2], %s140
          %s143 = ssub.s32 1024, 1024
          %144 = vsyncadd %s138, %s143
          %s145 = smul.addr %s15, 8
          %s146 = smul.addr %s145, 128
          %s147 = scalar_lea.hbm %s0, %s146
          %s148 = sshll.u32 %s141, 4
          %s149 = int_to_ptr.vmem [resolvable:$true] %s148
          %154 = dma.hbm_to_vmem [thread:$0]  %s147, 1024, %s149, %s138, 128, 128, 8
        $region28: #{tpu_custom_call.1} parent=23 // pred_fallthru
          _
      $region24: #{tpu_custom_call.1} parent=5 // pred_fallthru
        _
      %p155 = scmp.le.s32.totalorder 1, %s15
      %p156 = scmp.lt.s32.totalorder %s15, 3
      %p157 = pnand %p155, %p156
      %p158 = pneg %p157
      // Predicated region
      $region29: #{tpu_custom_call.1} parent=5 // pred_check
        _
      $region30: #{tpu_custom_call.1} parent=5 // pred_check_branch
        %160 = sbr.rel (%p157) target = $region32
      $region31: #{tpu_custom_call.1} parent=5 // pred_region
        %s161 = ssub.s32 %s15, 1
        %s162 = sand.u32 %s28, 1
        %s163 = scalar_lea.sflag [#allocation3], %s162
        %s164 = sand.u32 %s28, 1
        %s165 = smul.addr %s164, 64
        %s166 = scalar_lea.vmem [#allocation2], %s165
        // Predicated region
        $region33: #{tpu_custom_call.1} parent=31 // pred_check
          %p167 = pneg %p41
        $region34: #{tpu_custom_call.1} parent=31 // pred_check_branch
          %169 = sbr.rel (%p167) target = $region36
        $region35: #{tpu_custom_call.1} parent=31 // pred_region
          %170 = dma.done %s163, 1024
        $region36: #{tpu_custom_call.1} parent=31 // pred_fallthru
          _
        %s171 = sand.u32 %s28, 1
        %s172 = scalar_lea.sflag [#allocation3], %s171
        %s173 = sand.u32 %s28, 1
        %s174 = smul.addr %s173, 64
        %s175 = scalar_lea.vmem [#allocation2], %s174
        %p176 = pneg %p41
        %p177 = pneg %p38
        %p178 = pneg %p62
        %p179 = pneg %p59
        %p180 = pneg %p83
        %p181 = pneg %p80
        %p182 = pneg %p109
        %p183 = pneg %p106
        %s184 = sand.u32 %s96, 1
        %s185 = scalar_lea.sflag [#allocation4], %s184
        %s186 = sand.u32 %s96, 1
        %s187 = smul.addr %s186, 32
        %s188 = scalar_lea.vmem [#allocation5], %s187
        %v189 = vld [vmem:[%s166] sm:$0xff]
        %v190 = vld [vmem:[%s166 + $0x8] sm:$0xff]
        %v191 = vld [vmem:[%s166 + $0x10] sm:$0xff]
        %v192 = vld [vmem:[%s166 + $0x18] sm:$0xff]
        %v193 = vld [vmem:[%s166 + $0x20] sm:$0xff]
        %v194 = vld [vmem:[%s166 + $0x28] sm:$0xff]
        %v195 = vld [vmem:[%s166 + $0x30] sm:$0xff]
        %v196 = vld [vmem:[%s166 + $0x38] sm:$0xff]
        %v197 = vmul.f32 %v189, 1.442695
        %v198 = vpow.pop %v197
        %v199 = vmul.f32 %v190, 1.442695
        %v200 = vpow.pop %v199
        %v201 = vmul.f32 %v191, 1.442695
        %v202 = vpow.pop %v201
        %v203 = vmul.f32 %v192, 1.442695
        %v204 = vpow.pop %v203
        %v205 = vmul.f32 %v193, 1.442695
        %v206 = vpow.pop %v205
        %v207 = vmul.f32 %v194, 1.442695
        %v208 = vpow.pop %v207
        %v209 = vmul.f32 %v195, 1.442695
        %v210 = vpow.pop %v209
        %v211 = vmul.f32 %v196, 1.442695
        %v212 = vpow.pop %v211
        %vm213 = vcmask 130048
        %v214 = vsel %vm213, %v198, 0.0
        %v215 = vsel %vm213, %v202, 0.0
        %v216 = vadd.f32 %v214, %v215
        %v217 = vsel %vm213, %v206, 0.0
        %v218 = vadd.f32 %v216, %v217
        %v219 = vsel %vm213, %v210, 0.0
        %v220 = vadd.f32 %v218, %v219
        %v221 = vsel %vm213, %v200, 0.0
        %v222 = vsel %vm213, %v204, 0.0
        %v223 = vadd.f32 %v221, %v222
        %v224 = vsel %vm213, %v208, 0.0
        %v225 = vadd.f32 %v223, %v224
        %v226 = vsel %vm213, %v212, 0.0
        %v227 = vadd.f32 %v225, %v226
        %v228 = vld [vmem:[%s1] sm:$0xff]
        %v229 = vld [vmem:[%s2] sm:$0xff]
        %v230 = vld [vmem:[%s2 + $0x8] sm:$0xff]
        %v231 = vmul.f32 %v189, %v220
        %v232 = vmul.f32 %v190, %v227
        %v233 = vmul.f32 %v191, %v220
        %v234 = vmul.f32 %v192, %v227
        %v235 = vmul.f32 %v193, %v220
        %v236 = vmul.f32 %v194, %v227
        %v237 = vmul.f32 %v195, %v220
        %v238 = vmul.f32 %v196, %v227
        %v240 = vsel %vm213, %v231, 0
        %v243 = vsel %vm213, %v232, 0
        %v246 = vsel %vm213, %v233, 0
        %v249 = vsel %vm213, %v234, 0
        %v252 = vsel %vm213, %v235, 0
        %v255 = vsel %vm213, %v236, 0
        %v258 = vsel %vm213, %v237, 0
        %v261 = vsel %vm213, %v238, 0
        %263 = vmatprep.subr.mxu0 0.0
        %264 = vmatpush1.msra.mxu0 %v229
        %265 = vmatprep.subr.mxu0 0.0
        %266 = vmatpush1.msra.mxu0 %v230
        %267 = vmatprep.subr.mxu0 0.0
        %268 = vmatpush1.msra.mxu0 0.0
        %269 = vmatprep.subr.mxu0 0.0
        %270 = vmatpush1.msra.mxu0 0.0
        %271 = vmatprep.subr.mxu0 0.0
        %272 = vmatpush1.msra.mxu0 0.0
        %273 = vmatprep.subr.mxu0 0.0
        %274 = vmatpush1.msra.mxu0 0.0
        %275 = vmatprep.subr.mxu0 0.0
        %276 = vmatpush1.msra.mxu0 0.0
        %277 = vmatprep.subr.mxu0 0.0
        %278 = vmatpush1.msra.mxu0 0.0
        %279 = vmatprep.subr.mxu0 0.0
        %280 = vmatpush1.msra.mxu0 0.0
        %281 = vmatprep.subr.mxu0 0.0
        %282 = vmatpush1.msra.mxu0 0.0
        %283 = vmatprep.subr.mxu0 0.0
        %284 = vmatpush1.msra.mxu0 0.0
        %285 = vmatprep.subr.mxu0 0.0
        %286 = vmatpush1.msra.mxu0 0.0
        %287 = vmatprep.subr.mxu0 0.0
        %288 = vmatpush1.msra.mxu0 0.0
        %289 = vmatprep.subr.mxu0 0.0
        %290 = vmatpush1.msra.mxu0 0.0
        %291 = vmatprep.subr.mxu0 0.0
        %292 = vmatpush1.msra.mxu0 0.0
        %293 = vmatprep.subr.mxu0 0.0
        %294 = vmatpush1.msra.mxu0 0.0
        %295 = vmatprep.subr.mxu0 0.0
        %296 = vmatpush1.msra.mxu0 0.0
        %297 = vmatprep.subr.mxu0 0.0
        %298 = vmatpush1.msra.mxu0 0.0
        %299 = vmatprep.subr.mxu0 0.0
        %300 = vmatpush1.msra.mxu0 0.0
        %301 = vmatprep.subr.mxu0 0.0
        %302 = vmatpush1.msra.mxu0 0.0
        %303 = vmatprep.subr.mxu0 0.0
        %304 = vmatpush1.msra.mxu0 0.0
        %305 = vmatprep.subr.mxu0 0.0
        %306 = vmatpush1.msra.mxu0 0.0
        %307 = vmatprep.subr.mxu0 0.0
        %308 = vmatpush1.msra.mxu0 0.0
        %309 = vmatprep.subr.mxu0 0.0
        %310 = vmatpush1.msra.mxu0 0.0
        %311 = vmatprep.subr.mxu0 0.0
        %312 = vmatpush1.msra.mxu0 0.0
        %313 = vmatprep.subr.mxu0 0.0
        %314 = vmatpush1.msra.mxu0 0.0
        %315 = vmatprep.subr.mxu0 0.0
        %316 = vmatpush1.msra.mxu0 0.0
        %317 = vmatprep.subr.mxu0 0.0
        %318 = vmatpush1.msra.mxu0 0.0
        %319 = vmatprep.subr.mxu0 0.0
        %320 = vmatpush1.msra.mxu0 0.0
        %321 = vmatprep.subr.mxu0 0.0
        %322 = vmatpush1.msra.mxu0 0.0
        %323 = vmatprep.subr.mxu0 0.0
        %324 = vmatpush1.msra.mxu0 0.0
        %325 = vmatprep.subr.mxu0 0.0
        %326 = vmatpush1.msra.mxu0 0.0
        %327 = vmatprep.mubr.f32.mxu0 0.0
        %328 = vmatmul.mubr.f32.gmra.mrb[0].mxu0 %v240
        %v329 = vpop.f32.mrb[0].mxu0
        %v330 = vadd.f32 0.0, %v329
        %v331 = vpop.f32.mrb[0].mxu0
        %332 = vmatprep.mubr.f32.mxu0 0.0
        %333 = vmatmul.mubr.f32.gmra.mrb[0].mxu0 %v243
        %v334 = vpop.f32.mrb[0].mxu0
        %v335 = vadd.f32 0.0, %v334
        %v336 = vpop.f32.mrb[0].mxu0
        %337 = vmatprep.mubr.f32.mxu0 0.0
        %338 = vmatmul.mubr.f32.gmra.mrb[0].mxu0 %v246
        %v339 = vpop.f32.mrb[0].mxu0
        %v340 = vadd.f32 0.0, %v339
        %v341 = vpop.f32.mrb[0].mxu0
        %342 = vmatprep.mubr.f32.mxu0 0.0
        %343 = vmatmul.mubr.f32.gmra.mrb[0].mxu0 %v249
        %v344 = vpop.f32.mrb[0].mxu0
        %v345 = vadd.f32 0.0, %v344
        %v346 = vpop.f32.mrb[0].mxu0
        %347 = vmatprep.mubr.f32.mxu0 0.0
        %348 = vmatmul.mubr.f32.gmra.mrb[0].mxu0 %v252
        %v349 = vpop.f32.mrb[0].mxu0
        %v350 = vadd.f32 0.0, %v349
        %v351 = vpop.f32.mrb[0].mxu0
        %352 = vmatprep.mubr.f32.mxu0 0.0
        %353 = vmatmul.mubr.f32.gmra.mrb[0].mxu0 %v255
        %v354 = vpop.f32.mrb[0].mxu0
        %v355 = vadd.f32 0.0, %v354
        %v356 = vpop.f32.mrb[0].mxu0
        %357 = vmatprep.mubr.f32.mxu0 0.0
        %358 = vmatmul.mubr.f32.gmra.mrb[0].mxu0 %v258
        %v359 = vpop.f32.mrb[0].mxu0
        %v360 = vadd.f32 0.0, %v359
        %v361 = vpop.f32.mrb[0].mxu0
        %362 = vmatprep.mubr.f32.mxu0 0.0
        %363 = vmatmul.mubr.f32.gmra.mrb[0].mxu0 %v261
        %v364 = vpop.f32.mrb[0].mxu0
        %v365 = vadd.f32 0.0, %v364
        %v366 = vpop.f32.mrb[0].mxu0
        %367 = vdwg.mxu0
        %368 = vxpose.xlu0.b32.start [1/16] %v330, 128
        %369 = vxpose.xlu0.b32.cont [2/16] %v335, 128
        %370 = vxpose.xlu0.b32.cont [3/16] 0.0, 128
        %371 = vxpose.xlu0.b32.cont [4/16] 0.0, 128
        %372 = vxpose.xlu0.b32.cont [5/16] 0.0, 128
        %373 = vxpose.xlu0.b32.cont [6/16] 0.0, 128
        %374 = vxpose.xlu0.b32.cont [7/16] 0.0, 128
        %375 = vxpose.xlu0.b32.cont [8/16] 0.0, 128
        %376 = vxpose.xlu0.b32.cont [9/16] 0.0, 128
        %377 = vxpose.xlu0.b32.cont [10/16] 0.0, 128
        %378 = vxpose.xlu0.b32.cont [11/16] 0.0, 128
        %379 = vxpose.xlu0.b32.cont [12/16] 0.0, 128
        %380 = vxpose.xlu0.b32.cont [13/16] 0.0, 128
        %381 = vxpose.xlu0.b32.cont [14/16] 0.0, 128
        %382 = vxpose.xlu0.b32.cont [15/16] 0.0, 128
        %383 = vxpose.xlu0.b32.end [16/16] 0.0, 128
        %v384 = vpop.trf.xlu0
        %v385 = vpop.trf.xlu0
        %v386 = vpop.trf.xlu0
        %v387 = vpop.trf.xlu0
        %v388 = vpop.trf.xlu0
        %v389 = vpop.trf.xlu0
        %v390 = vpop.trf.xlu0
        %v391 = vpop.trf.xlu0
        %v392 = vpop.trf.xlu0
        %v393 = vpop.trf.xlu0
        %v394 = vpop.trf.xlu0
        %v395 = vpop.trf.xlu0
        %v396 = vpop.trf.xlu0
        %v397 = vpop.trf.xlu0
        %v398 = vpop.trf.xlu0
        %v399 = vpop.trf.xlu0
        %400 = vxpose.xlu0.b32.start [1/16] %v340, 128
        %401 = vxpose.xlu0.b32.cont [2/16] %v345, 128
        %402 = vxpose.xlu0.b32.cont [3/16] 0.0, 128
        %403 = vxpose.xlu0.b32.cont [4/16] 0.0, 128
        %404 = vxpose.xlu0.b32.cont [5/16] 0.0, 128
        %405 = vxpose.xlu0.b32.cont [6/16] 0.0, 128
        %406 = vxpose.xlu0.b32.cont [7/16] 0.0, 128
        %407 = vxpose.xlu0.b32.cont [8/16] 0.0, 128
        %408 = vxpose.xlu0.b32.cont [9/16] 0.0, 128
        %409 = vxpose.xlu0.b32.cont [10/16] 0.0, 128
        %410 = vxpose.xlu0.b32.cont [11/16] 0.0, 128
        %411 = vxpose.xlu0.b32.cont [12/16] 0.0, 128
        %412 = vxpose.xlu0.b32.cont [13/16] 0.0, 128
        %413 = vxpose.xlu0.b32.cont [14/16] 0.0, 128
        %414 = vxpose.xlu0.b32.cont [15/16] 0.0, 128
        %415 = vxpose.xlu0.b32.end [16/16] 0.0, 128
        %v416 = vpop.trf.xlu0
        %v417 = vpop.trf.xlu0
        %v418 = vpop.trf.xlu0
        %v419 = vpop.trf.xlu0
        %v420 = vpop.trf.xlu0
        %v421 = vpop.trf.xlu0
        %v422 = vpop.trf.xlu0
        %v423 = vpop.trf.xlu0
        %v424 = vpop.trf.xlu0
        %v425 = vpop.trf.xlu0
        %v426 = vpop.trf.xlu0
        %v427 = vpop.trf.xlu0
        %v428 = vpop.trf.xlu0
        %v429 = vpop.trf.xlu0
        %v430 = vpop.trf.xlu0
        %v431 = vpop.trf.xlu0
        %432 = vxpose.xlu0.b32.start [1/16] %v350, 128
        %433 = vxpose.xlu0.b32.cont [2/16] %v355, 128
        %434 = vxpose.xlu0.b32.cont [3/16] 0.0, 128
        %435 = vxpose.xlu0.b32.cont [4/16] 0.0, 128
        %436 = vxpose.xlu0.b32.cont [5/16] 0.0, 128
        %437 = vxpose.xlu0.b32.cont [6/16] 0.0, 128
        %438 = vxpose.xlu0.b32.cont [7/16] 0.0, 128
        %439 = vxpose.xlu0.b32.cont [8/16] 0.0, 128
        %440 = vxpose.xlu0.b32.cont [9/16] 0.0, 128
        %441 = vxpose.xlu0.b32.cont [10/16] 0.0, 128
        %442 = vxpose.xlu0.b32.cont [11/16] 0.0, 128
        %443 = vxpose.xlu0.b32.cont [12/16] 0.0, 128
        %444 = vxpose.xlu0.b32.cont [13/16] 0.0, 128
        %445 = vxpose.xlu0.b32.cont [14/16] 0.0, 128
        %446 = vxpose.xlu0.b32.cont [15/16] 0.0, 128
        %447 = vxpose.xlu0.b32.end [16/16] 0.0, 128
        %v448 = vpop.trf.xlu0
        %v449 = vpop.trf.xlu0
        %v450 = vpop.trf.xlu0
        %v451 = vpop.trf.xlu0
        %v452 = vpop.trf.xlu0
        %v453 = vpop.trf.xlu0
        %v454 = vpop.trf.xlu0
        %v455 = vpop.trf.xlu0
        %v456 = vpop.trf.xlu0
        %v457 = vpop.trf.xlu0
        %v458 = vpop.trf.xlu0
        %v459 = vpop.trf.xlu0
        %v460 = vpop.trf.xlu0
        %v461 = vpop.trf.xlu0
        %v462 = vpop.trf.xlu0
        %v463 = vpop.trf.xlu0
        %464 = vxpose.xlu0.b32.start [1/16] %v360, 128
        %465 = vxpose.xlu0.b32.cont [2/16] %v365, 128
        %466 = vxpose.xlu0.b32.cont [3/16] 0.0, 128
        %467 = vxpose.xlu0.b32.cont [4/16] 0.0, 128
        %468 = vxpose.xlu0.b32.cont [5/16] 0.0, 128
        %469 = vxpose.xlu0.b32.cont [6/16] 0.0, 128
        %470 = vxpose.xlu0.b32.cont [7/16] 0.0, 128
        %471 = vxpose.xlu0.b32.cont [8/16] 0.0, 128
        %472 = vxpose.xlu0.b32.cont [9/16] 0.0, 128
        %473 = vxpose.xlu0.b32.cont [10/16] 0.0, 128
        %474 = vxpose.xlu0.b32.cont [11/16] 0.0, 128
        %475 = vxpose.xlu0.b32.cont [12/16] 0.0, 128
        %476 = vxpose.xlu0.b32.cont [13/16] 0.0, 128
        %477 = vxpose.xlu0.b32.cont [14/16] 0.0, 128
        %478 = vxpose.xlu0.b32.cont [15/16] 0.0, 128
        %479 = vxpose.xlu0.b32.end [16/16] 0.0, 128
        %v480 = vpop.trf.xlu0
        %v481 = vpop.trf.xlu0
        %v482 = vpop.trf.xlu0
        %v483 = vpop.trf.xlu0
        %v484 = vpop.trf.xlu0
        %v485 = vpop.trf.xlu0
        %v486 = vpop.trf.xlu0
        %v487 = vpop.trf.xlu0
        %v488 = vpop.trf.xlu0
        %v489 = vpop.trf.xlu0
        %v490 = vpop.trf.xlu0
        %v491 = vpop.trf.xlu0
        %v492 = vpop.trf.xlu0
        %v493 = vpop.trf.xlu0
        %v494 = vpop.trf.xlu0
        %v495 = vpop.trf.xlu0
        %v497 = vsel %vm213, %v384, 0
        %v500 = vsel %vm213, %v416, 0
        %v503 = vsel %vm213, %v448, 0
        %v506 = vsel %vm213, %v480, 0
        %v509 = vsel %vm213, %v228, 0
        %511 = vmatprep.subr.mxu0 0.0
        %512 = vmatpush1.xpose.msra.mxu0 %v509
        %513 = vmatprep.subr.mxu0 0.0
        %514 = vmatpush1.xpose.msra.mxu0 0.0
        %515 = vmatprep.subr.mxu0 0.0
        %516 = vmatpush1.xpose.msra.mxu0 0.0
        %517 = vmatprep.subr.mxu0 0.0
        %518 = vmatpush1.xpose.msra.mxu0 0.0
        %519 = vmatprep.subr.mxu0 0.0
        %520 = vmatpush1.xpose.msra.mxu0 0.0
        %521 = vmatprep.subr.mxu0 0.0
        %522 = vmatpush1.xpose.msra.mxu0 0.0
        %523 = vmatprep.subr.mxu0 0.0
        %524 = vmatpush1.xpose.msra.mxu0 0.0
        %525 = vmatprep.subr.mxu0 0.0
        %526 = vmatpush1.xpose.msra.mxu0 0.0
        %527 = vmatprep.subr.mxu0 0.0
        %528 = vmatpush1.xpose.msra.mxu0 0.0
        %529 = vmatprep.subr.mxu0 0.0
        %530 = vmatpush1.xpose.msra.mxu0 0.0
        %531 = vmatprep.subr.mxu0 0.0
        %532 = vmatpush1.xpose.msra.mxu0 0.0
        %533 = vmatprep.subr.mxu0 0.0
        %534 = vmatpush1.xpose.msra.mxu0 0.0
        %535 = vmatprep.subr.mxu0 0.0
        %536 = vmatpush1.xpose.msra.mxu0 0.0
        %537 = vmatprep.subr.mxu0 0.0
        %538 = vmatpush1.xpose.msra.mxu0 0.0
        %539 = vmatprep.subr.mxu0 0.0
        %540 = vmatpush1.xpose.msra.mxu0 0.0
        %541 = vmatprep.subr.mxu0 0.0
        %542 = vmatpush1.xpose.msra.mxu0 0.0
        %543 = vmatprep.subr.mxu0 0.0
        %544 = vmatpush1.xpose.msra.mxu0 0.0
        %545 = vmatprep.subr.mxu0 0.0
        %546 = vmatpush1.xpose.msra.mxu0 0.0
        %547 = vmatprep.subr.mxu0 0.0
        %548 = vmatpush1.xpose.msra.mxu0 0.0
        %549 = vmatprep.subr.mxu0 0.0
        %550 = vmatpush1.xpose.msra.mxu0 0.0
        %551 = vmatprep.subr.mxu0 0.0
        %552 = vmatpush1.xpose.msra.mxu0 0.0
        %553 = vmatprep.subr.mxu0 0.0
        %554 = vmatpush1.xpose.msra.mxu0 0.0
        %555 = vmatprep.subr.mxu0 0.0
        %556 = vmatpush1.xpose.msra.mxu0 0.0
        %557 = vmatprep.subr.mxu0 0.0
        %558 = vmatpush1.xpose.msra.mxu0 0.0
        %559 = vmatprep.subr.mxu0 0.0
        %560 = vmatpush1.xpose.msra.mxu0 0.0
        %561 = vmatprep.subr.mxu0 0.0
        %562 = vmatpush1.xpose.msra.mxu0 0.0
        %563 = vmatprep.subr.mxu0 0.0
        %564 = vmatpush1.xpose.msra.mxu0 0.0
        %565 = vmatprep.subr.mxu0 0.0
        %566 = vmatpush1.xpose.msra.mxu0 0.0
        %567 = vmatprep.subr.mxu0 0.0
        %568 = vmatpush1.xpose.msra.mxu0 0.0
        %569 = vmatprep.subr.mxu0 0.0
        %570 = vmatpush1.xpose.msra.mxu0 0.0
        %571 = vmatprep.subr.mxu0 0.0
        %572 = vmatpush1.xpose.msra.mxu0 0.0
        %573 = vmatprep.subr.mxu0 0.0
        %574 = vmatpush1.xpose.msra.mxu0 0.0
        %575 = vmatprep.mubr.f32.mxu0 0.0
        %576 = vmatmul.mubr.f32.gmra.mrb[0].mxu0 %v497
        %v577 = vpop.f32.mrb[0].mxu0
        %v578 = vadd.f32 0.0, %v577
        %v579 = vpop.f32.mrb[0].mxu0
        %580 = vmatprep.mubr.f32.mxu0 0.0
        %581 = vmatmul.mubr.f32.gmra.mrb[0].mxu0 %v500
        %v582 = vpop.f32.mrb[0].mxu0
        %v583 = vadd.f32 0.0, %v582
        %v584 = vpop.f32.mrb[0].mxu0
        %585 = vmatprep.mubr.f32.mxu0 0.0
        %586 = vmatmul.mubr.f32.gmra.mrb[0].mxu0 %v503
        %v587 = vpop.f32.mrb[0].mxu0
        %v588 = vadd.f32 0.0, %v587
        %v589 = vpop.f32.mrb[0].mxu0
        %590 = vmatprep.mubr.f32.mxu0 0.0
        %591 = vmatmul.mubr.f32.gmra.mrb[0].mxu0 %v506
        %v592 = vpop.f32.mrb[0].mxu0
        %v593 = vadd.f32 0.0, %v592
        %v594 = vpop.f32.mrb[0].mxu0
        %595 = vdwg.mxu0
        %596 = vxpose.xlu0.b32.start [1/16] %v578, 128
        %597 = vxpose.xlu0.b32.cont [2/16] 0.0, 128
        %598 = vxpose.xlu0.b32.cont [3/16] 0.0, 128
        %599 = vxpose.xlu0.b32.cont [4/16] 0.0, 128
        %600 = vxpose.xlu0.b32.cont [5/16] 0.0, 128
        %601 = vxpose.xlu0.b32.cont [6/16] 0.0, 128
        %602 = vxpose.xlu0.b32.cont [7/16] 0.0, 128
        %603 = vxpose.xlu0.b32.cont [8/16] 0.0, 128
        %604 = vxpose.xlu0.b32.cont [9/16] 0.0, 128
        %605 = vxpose.xlu0.b32.cont [10/16] 0.0, 128
        %606 = vxpose.xlu0.b32.cont [11/16] 0.0, 128
        %607 = vxpose.xlu0.b32.cont [12/16] 0.0, 128
        %608 = vxpose.xlu0.b32.cont [13/16] 0.0, 128
        %609 = vxpose.xlu0.b32.cont [14/16] 0.0, 128
        %610 = vxpose.xlu0.b32.cont [15/16] 0.0, 128
        %611 = vxpose.xlu0.b32.end [16/16] 0.0, 128
        %v612 = vpop.trf.xlu0
        %v613 = vpop.trf.xlu0
        %v614 = vpop.trf.xlu0
        %v615 = vpop.trf.xlu0
        %v616 = vpop.trf.xlu0
        %v617 = vpop.trf.xlu0
        %v618 = vpop.trf.xlu0
        %v619 = vpop.trf.xlu0
        %v620 = vpop.trf.xlu0
        %v621 = vpop.trf.xlu0
        %v622 = vpop.trf.xlu0
        %v623 = vpop.trf.xlu0
        %v624 = vpop.trf.xlu0
        %v625 = vpop.trf.xlu0
        %v626 = vpop.trf.xlu0
        %v627 = vpop.trf.xlu0
        %628 = vxpose.xlu0.b32.start [1/16] %v583, 128
        %629 = vxpose.xlu0.b32.cont [2/16] 0.0, 128
        %630 = vxpose.xlu0.b32.cont [3/16] 0.0, 128
        %631 = vxpose.xlu0.b32.cont [4/16] 0.0, 128
        %632 = vxpose.xlu0.b32.cont [5/16] 0.0, 128
        %633 = vxpose.xlu0.b32.cont [6/16] 0.0, 128
        %634 = vxpose.xlu0.b32.cont [7/16] 0.0, 128
        %635 = vxpose.xlu0.b32.cont [8/16] 0.0, 128
        %636 = vxpose.xlu0.b32.cont [9/16] 0.0, 128
        %637 = vxpose.xlu0.b32.cont [10/16] 0.0, 128
        %638 = vxpose.xlu0.b32.cont [11/16] 0.0, 128
        %639 = vxpose.xlu0.b32.cont [12/16] 0.0, 128
        %640 = vxpose.xlu0.b32.cont [13/16] 0.0, 128
        %641 = vxpose.xlu0.b32.cont [14/16] 0.0, 128
        %642 = vxpose.xlu0.b32.cont [15/16] 0.0, 128
        %643 = vxpose.xlu0.b32.end [16/16] 0.0, 128
        %v644 = vpop.trf.xlu0
        %v645 = vpop.trf.xlu0
        %v646 = vpop.trf.xlu0
        %v647 = vpop.trf.xlu0
        %v648 = vpop.trf.xlu0
        %v649 = vpop.trf.xlu0
        %v650 = vpop.trf.xlu0
        %v651 = vpop.trf.xlu0
        %v652 = vpop.trf.xlu0
        %v653 = vpop.trf.xlu0
        %v654 = vpop.trf.xlu0
        %v655 = vpop.trf.xlu0
        %v656 = vpop.trf.xlu0
        %v657 = vpop.trf.xlu0
        %v658 = vpop.trf.xlu0
        %v659 = vpop.trf.xlu0
        %660 = vxpose.xlu0.b32.start [1/16] %v588, 128
        %661 = vxpose.xlu0.b32.cont [2/16] 0.0, 128
        %662 = vxpose.xlu0.b32.cont [3/16] 0.0, 128
        %663 = vxpose.xlu0.b32.cont [4/16] 0.0, 128
        %664 = vxpose.xlu0.b32.cont [5/16] 0.0, 128
        %665 = vxpose.xlu0.b32.cont [6/16] 0.0, 128
        %666 = vxpose.xlu0.b32.cont [7/16] 0.0, 128
        %667 = vxpose.xlu0.b32.cont [8/16] 0.0, 128
        %668 = vxpose.xlu0.b32.cont [9/16] 0.0, 128
        %669 = vxpose.xlu0.b32.cont [10/16] 0.0, 128
        %670 = vxpose.xlu0.b32.cont [11/16] 0.0, 128
        %671 = vxpose.xlu0.b32.cont [12/16] 0.0, 128
        %672 = vxpose.xlu0.b32.cont [13/16] 0.0, 128
        %673 = vxpose.xlu0.b32.cont [14/16] 0.0, 128
        %674 = vxpose.xlu0.b32.cont [15/16] 0.0, 128
        %675 = vxpose.xlu0.b32.end [16/16] 0.0, 128
        %v676 = vpop.trf.xlu0
        %v677 = vpop.trf.xlu0
        %v678 = vpop.trf.xlu0
        %v679 = vpop.trf.xlu0
        %v680 = vpop.trf.xlu0
        %v681 = vpop.trf.xlu0
        %v682 = vpop.trf.xlu0
        %v683 = vpop.trf.xlu0
        %v684 = vpop.trf.xlu0
        %v685 = vpop.trf.xlu0
        %v686 = vpop.trf.xlu0
        %v687 = vpop.trf.xlu0
        %v688 = vpop.trf.xlu0
        %v689 = vpop.trf.xlu0
        %v690 = vpop.trf.xlu0
        %v691 = vpop.trf.xlu0
        %692 = vxpose.xlu0.b32.start [1/16] %v593, 128
        %693 = vxpose.xlu0.b32.cont [2/16] 0.0, 128
        %694 = vxpose.xlu0.b32.cont [3/16] 0.0, 128
        %695 = vxpose.xlu0.b32.cont [4/16] 0.0, 128
        %696 = vxpose.xlu0.b32.cont [5/16] 0.0, 128
        %697 = vxpose.xlu0.b32.cont [6/16] 0.0, 128
        %698 = vxpose.xlu0.b32.cont [7/16] 0.0, 128
        %699 = vxpose.xlu0.b32.cont [8/16] 0.0, 128
        %700 = vxpose.xlu0.b32.cont [9/16] 0.0, 128
        %701 = vxpose.xlu0.b32.cont [10/16] 0.0, 128
        %702 = vxpose.xlu0.b32.cont [11/16] 0.0, 128
        %703 = vxpose.xlu0.b32.cont [12/16] 0.0, 128
        %704 = vxpose.xlu0.b32.cont [13/16] 0.0, 128
        %705 = vxpose.xlu0.b32.cont [14/16] 0.0, 128
        %706 = vxpose.xlu0.b32.cont [15/16] 0.0, 128
        %707 = vxpose.xlu0.b32.end [16/16] 0.0, 128
        %v708 = vpop.trf.xlu0
        %v709 = vpop.trf.xlu0
        %v710 = vpop.trf.xlu0
        %v711 = vpop.trf.xlu0
        %v712 = vpop.trf.xlu0
        %v713 = vpop.trf.xlu0
        %v714 = vpop.trf.xlu0
        %v715 = vpop.trf.xlu0
        %v716 = vpop.trf.xlu0
        %v717 = vpop.trf.xlu0
        %v718 = vpop.trf.xlu0
        %v719 = vpop.trf.xlu0
        %v720 = vpop.trf.xlu0
        %v721 = vpop.trf.xlu0
        %v722 = vpop.trf.xlu0
        %v723 = vpop.trf.xlu0
        %v725 = vsel %vm213, %v220, 0
        %v728 = vsel %vm213, %v227, 0
        %730 = vmatprep.subr.mxu0 0.0
        %731 = vmatpush1.msra.mxu0 %v229
        %732 = vmatprep.subr.mxu0 0.0
        %733 = vmatpush1.msra.mxu0 %v230
        %734 = vmatprep.subr.mxu0 0.0
        %735 = vmatpush1.msra.mxu0 0.0
        %736 = vmatprep.subr.mxu0 0.0
        %737 = vmatpush1.msra.mxu0 0.0
        %738 = vmatprep.subr.mxu0 0.0
        %739 = vmatpush1.msra.mxu0 0.0
        %740 = vmatprep.subr.mxu0 0.0
        %741 = vmatpush1.msra.mxu0 0.0
        %742 = vmatprep.subr.mxu0 0.0
        %743 = vmatpush1.msra.mxu0 0.0
        %744 = vmatprep.subr.mxu0 0.0
        %745 = vmatpush1.msra.mxu0 0.0
        %746 = vmatprep.subr.mxu0 0.0
        %747 = vmatpush1.msra.mxu0 0.0
        %748 = vmatprep.subr.mxu0 0.0
        %749 = vmatpush1.msra.mxu0 0.0
        %750 = vmatprep.subr.mxu0 0.0
        %751 = vmatpush1.msra.mxu0 0.0
        %752 = vmatprep.subr.mxu0 0.0
        %753 = vmatpush1.msra.mxu0 0.0
        %754 = vmatprep.subr.mxu0 0.0
        %755 = vmatpush1.msra.mxu0 0.0
        %756 = vmatprep.subr.mxu0 0.0
        %757 = vmatpush1.msra.mxu0 0.0
        %758 = vmatprep.subr.mxu0 0.0
        %759 = vmatpush1.msra.mxu0 0.0
        %760 = vmatprep.subr.mxu0 0.0
        %761 = vmatpush1.msra.mxu0 0.0
        %762 = vmatprep.subr.mxu0 0.0
        %763 = vmatpush1.msra.mxu0 0.0
        %764 = vmatprep.subr.mxu0 0.0
        %765 = vmatpush1.msra.mxu0 0.0
        %766 = vmatprep.subr.mxu0 0.0
        %767 = vmatpush1.msra.mxu0 0.0
        %768 = vmatprep.subr.mxu0 0.0
        %769 = vmatpush1.msra.mxu0 0.0
        %770 = vmatprep.subr.mxu0 0.0
        %771 = vmatpush1.msra.mxu0 0.0
        %772 = vmatprep.subr.mxu0 0.0
        %773 = vmatpush1.msra.mxu0 0.0
        %774 = vmatprep.subr.mxu0 0.0
        %775 = vmatpush1.msra.mxu0 0.0
        %776 = vmatprep.subr.mxu0 0.0
        %777 = vmatpush1.msra.mxu0 0.0
        %778 = vmatprep.subr.mxu0 0.0
        %779 = vmatpush1.msra.mxu0 0.0
        %780 = vmatprep.subr.mxu0 0.0
        %781 = vmatpush1.msra.mxu0 0.0
        %782 = vmatprep.subr.mxu0 0.0
        %783 = vmatpush1.msra.mxu0 0.0
        %784 = vmatprep.subr.mxu0 0.0
        %785 = vmatpush1.msra.mxu0 0.0
        %786 = vmatprep.subr.mxu0 0.0
        %787 = vmatpush1.msra.mxu0 0.0
        %788 = vmatprep.subr.mxu0 0.0
        %789 = vmatpush1.msra.mxu0 0.0
        %790 = vmatprep.subr.mxu0 0.0
        %791 = vmatpush1.msra.mxu0 0.0
        %792 = vmatprep.subr.mxu0 0.0
        %793 = vmatpush1.msra.mxu0 0.0
        %794 = vmatprep.mubr.f32.mxu0 0.0
        %795 = vmatmul.mubr.f32.gmra.mrb[0].mxu0 %v725
        %v796 = vpop.f32.mrb[0].mxu0
        %v797 = vadd.f32 0.0, %v796
        %v798 = vpop.f32.mrb[0].mxu0
        %799 = vmatprep.mubr.f32.mxu0 0.0
        %800 = vmatmul.mubr.f32.gmra.mrb[0].mxu0 %v728
        %v801 = vpop.f32.mrb[0].mxu0
        %v802 = vadd.f32 0.0, %v801
        %v803 = vpop.f32.mrb[0].mxu0
        %804 = vdwg.mxu0
        %805 = vmatprep.subr.mxu0 0.0
        %806 = vmatpush1.msra.mxu0 %v797
        %807 = vmatprep.subr.mxu0 0.0
        %808 = vmatpush1.msra.mxu0 %v802
        %809 = vmatprep.subr.mxu0 0.0
        %810 = vmatpush1.msra.mxu0 0.0
        %811 = vmatprep.subr.mxu0 0.0
        %812 = vmatpush1.msra.mxu0 0.0
        %813 = vmatprep.subr.mxu0 0.0
        %814 = vmatpush1.msra.mxu0 0.0
        %815 = vmatprep.subr.mxu0 0.0
        %816 = vmatpush1.msra.mxu0 0.0
        %817 = vmatprep.subr.mxu0 0.0
        %818 = vmatpush1.msra.mxu0 0.0
        %819 = vmatprep.subr.mxu0 0.0
        %820 = vmatpush1.msra.mxu0 0.0
        %821 = vmatprep.subr.mxu0 0.0
        %822 = vmatpush1.msra.mxu0 0.0
        %823 = vmatprep.subr.mxu0 0.0
        %824 = vmatpush1.msra.mxu0 0.0
        %825 = vmatprep.subr.mxu0 0.0
        %826 = vmatpush1.msra.mxu0 0.0
        %827 = vmatprep.subr.mxu0 0.0
        %828 = vmatpush1.msra.mxu0 0.0
        %829 = vmatprep.subr.mxu0 0.0
        %830 = vmatpush1.msra.mxu0 0.0
        %831 = vmatprep.subr.mxu0 0.0
        %832 = vmatpush1.msra.mxu0 0.0
        %833 = vmatprep.subr.mxu0 0.0
        %834 = vmatpush1.msra.mxu0 0.0
        %835 = vmatprep.subr.mxu0 0.0
        %836 = vmatpush1.msra.mxu0 0.0
        %837 = vmatprep.subr.mxu0 0.0
        %838 = vmatpush1.msra.mxu0 0.0
        %839 = vmatprep.subr.mxu0 0.0
        %840 = vmatpush1.msra.mxu0 0.0
        %841 = vmatprep.subr.mxu0 0.0
        %842 = vmatpush1.msra.mxu0 0.0
        %843 = vmatprep.subr.mxu0 0.0
        %844 = vmatpush1.msra.mxu0 0.0
        %845 = vmatprep.subr.mxu0 0.0
        %846 = vmatpush1.msra.mxu0 0.0
        %847 = vmatprep.subr.mxu0 0.0
        %848 = vmatpush1.msra.mxu0 0.0
        %849 = vmatprep.subr.mxu0 0.0
        %850 = vmatpush1.msra.mxu0 0.0
        %851 = vmatprep.subr.mxu0 0.0
        %852 = vmatpush1.msra.mxu0 0.0
        %853 = vmatprep.subr.mxu0 0.0
        %854 = vmatpush1.msra.mxu0 0.0
        %855 = vmatprep.subr.mxu0 0.0
        %856 = vmatpush1.msra.mxu0 0.0
        %857 = vmatprep.subr.mxu0 0.0
        %858 = vmatpush1.msra.mxu0 0.0
        %859 = vmatprep.subr.mxu0 0.0
        %860 = vmatpush1.msra.mxu0 0.0
        %861 = vmatprep.subr.mxu0 0.0
        %862 = vmatpush1.msra.mxu0 0.0
        %863 = vmatprep.subr.mxu0 0.0
        %864 = vmatpush1.msra.mxu0 0.0
        %865 = vmatprep.subr.mxu0 0.0
        %866 = vmatpush1.msra.mxu0 0.0
        %867 = vmatprep.subr.mxu0 0.0
        %868 = vmatpush1.msra.mxu0 0.0
        %869 = vmatprep.mubr.f32.mxu0 0.0
        %870 = vmatmul.mubr.f32.gmra.mrb[0].mxu0 %v509
        %v871 = vpop.f32.mrb[0].mxu0
        %v872 = vadd.f32 0.0, %v871
        %v873 = vpop.f32.mrb[0].mxu0
        %874 = vdwg.mxu0
        %v875 = vrcp.pop %v872
        %v876 = vmul.f32 %v612, %v875
        %v877 = vmul.f32 %v644, %v875
        %v878 = vmul.f32 %v676, %v875
        %v879 = vmul.f32 %v708, %v875
        %vm880 = vcmask 64512
        %881 = vst.msk [vmem:[%s188] sm:$0xff] %vm880, %v876
        %882 = vst.msk [vmem:[%s188 + $0x8] sm:$0xff] %vm880, %v877
        %883 = vst.msk [vmem:[%s188 + $0x10] sm:$0xff] %vm880, %v878
        %884 = vst.msk [vmem:[%s188 + $0x18] sm:$0xff] %vm880, %v879
        %s885 = sand.u32 %s96, 1
        %s886 = scalar_lea.sflag [#allocation4], %s885
        %s887 = sand.u32 %s96, 1
        %s888 = smul.addr %s887, 32
        %s889 = scalar_lea.vmem [#allocation5], %s888
        // Predicated region
        $region37: #{tpu_custom_call.1} parent=31 // pred_check
          %p890 = pneg %p106
        $region38: #{tpu_custom_call.1} parent=31 // pred_check_branch
          %892 = sbr.rel (%p890) target = $region40
        $region39: #{tpu_custom_call.1} parent=31 // pred_region
          %s894 = ssub.s32 512, 512
          %895 = vsyncadd %s886, %s894
          %s896 = smul.addr %s20, 4
          %s897 = smul.addr %s896, 128
          %s898 = scalar_lea.hbm %s3, %s897
          %s899 = sshll.u32 %s889, 4
          %s900 = int_to_ptr.vmem [resolvable:$true] %s899
          %905 = dma.vmem_to_hbm [thread:$0]  %s900, 512, %s898, %s886, 128, 128, 8
        $region40: #{tpu_custom_call.1} parent=31 // pred_fallthru
          _
      $region32: #{tpu_custom_call.1} parent=5 // pred_fallthru
        _
      %p906 = scmp.le.s32.totalorder 2, %s15
      // Predicated region
      $region41: #{tpu_custom_call.1} parent=5 // pred_check
        %p907 = pneg %p906
      $region42: #{tpu_custom_call.1} parent=5 // pred_check_branch
        %909 = sbr.rel (%p907) target = $region44
      $region43: #{tpu_custom_call.1} parent=5 // pred_region
        %s910 = ssub.s32 %s15, 2
        // Predicated region
        $region45: #{tpu_custom_call.1} parent=43 // pred_check
          %p911 = pneg %p112
        $region46: #{tpu_custom_call.1} parent=43 // pred_check_branch
          %913 = sbr.rel (%p911) target = $region48
        $region47: #{tpu_custom_call.1} parent=43 // pred_region
          %s914 = sand.u32 %s97, 1
          %s915 = scalar_lea.sflag [#allocation4], %s914
          %s916 = sand.u32 %s97, 1
          %s917 = smul.addr %s916, 32
          %s918 = scalar_lea.vmem [#allocation5], %s917
          %919 = dma.done %s915, 512
        $region48: #{tpu_custom_call.1} parent=43 // pred_fallthru
          _
      $region44: #{tpu_custom_call.1} parent=5 // pred_fallthru
        _
    $region6: #{tpu_custom_call.1} parent=1 // loop_footer
      %s19 = sadd.s32 1, %s15
    $region7: #{tpu_custom_call.1} parent=1 // loop_footer_branch
      %14 = sbr.rel target = $region3
    $region8: #{tpu_custom_call.1} parent=1 // loop_exit
      _
    %920 = vsyncpa [#allocation3], 1
    %s921 = scalar_lea.sflag [#allocation3], 1
    %922 = vsyncpa %s921, 1
    %923 = vsyncpa [#allocation4], 1
    %s924 = scalar_lea.sflag [#allocation4], 1
    %925 = vsyncpa %s924, 1

</llo_original>
